<compile_context>
chip_gen: v6e
topology: v6e:2x2x1
jax: 0.10.0
libtpu: 0.0.40
codegen_flags: <defaults>
</compile_context>

<pallas_src>
import jax
import jax.numpy as jnp
from jax.experimental import pallas as pl
from jax.experimental.pallas import tpu as pltpu

LANE = 128             # vreg lane width
MAX_TILE_ROWS = 2048   # rows per grid step (multiple of 32 for int8 packing)
ROW_ALIGN = 32         # int8 sublane-packing alignment


def _elementwise_kernel(x_ref,
                        add_ref, sub_ref, mul_ref, div_ref,
                        gt_ref, lt_ref, eq_ref):
    x = x_ref[...]
    add_ref[...] = x + 2.0
    sub_ref[...] = x - 3.0
    mul_ref[...] = x * 4.0
    div_ref[...] = x / 5.0
    gt_ref[...] = (x > 1.0).astype(jnp.int8)
    lt_ref[...] = (x < 5.0).astype(jnp.int8)
    eq_ref[...] = (x == 2.0).astype(jnp.int8)


def _choose_tiling(n_elems):
    """Pick (total_rows, rows_per_tile) for the flattened (rows, 128) slab."""
    rows_needed = -(-n_elems // LANE)
    if rows_needed <= MAX_TILE_ROWS:
        # Single block covering everything; keep rows int8-tile aligned.
        tr = ((rows_needed + ROW_ALIGN - 1) // ROW_ALIGN) * ROW_ALIGN
        rows = tr
    else:
        tr = MAX_TILE_ROWS
        rows = ((rows_needed + tr - 1) // tr) * tr
    return rows, tr


def pt_module_forward(x):
    """x: float32 array of any shape (e.g. NCHW). Returns the 7 outputs."""
    orig_shape = x.shape
    n_elems = x.size

    rows, tr = _choose_tiling(n_elems)
    padded = rows * LANE

    x_flat = jnp.reshape(x, (-1,))
    if padded != n_elems:
        x_flat = jnp.pad(x_flat, (0, padded - n_elems))
    x2d = jnp.reshape(x_flat, (rows, LANE))

    f32 = jax.ShapeDtypeStruct((rows, LANE), jnp.float32)
    i8 = jax.ShapeDtypeStruct((rows, LANE), jnp.int8)

    blk = pl.BlockSpec((tr, LANE), lambda i: (i, 0))
    grid = (rows // tr,)

    outs = pl.pallas_call(
        _elementwise_kernel,
        out_shape=(f32, f32, f32, f32, i8, i8, i8),
        grid=grid,
        in_specs=[blk],
        out_specs=(blk, blk, blk, blk, blk, blk, blk),
        compiler_params=pltpu.CompilerParams(
            dimension_semantics=("parallel",)),
    )(x2d)

    def unflat(a, dtype=None):
        a = jnp.reshape(a, (-1,))
        if padded != n_elems:
            a = a[:n_elems]
        a = jnp.reshape(a, orig_shape)
        if dtype is not None:
            a = a.astype(dtype)
        return a

    addition = unflat(outs[0])
    subtraction = unflat(outs[1])
    multiplication = unflat(outs[2])
    division = unflat(outs[3])
    greater_than = unflat(outs[4], jnp.bool_)
    less_than = unflat(outs[5], jnp.bool_)
    equal_to = unflat(outs[6], jnp.bool_)
    return (addition, subtraction, multiplication, division,
            greater_than, less_than, equal_to)


if __name__ == "__main__":
    key = jax.random.PRNGKey(0)
    # NCHW input, small shape
    x = jax.random.normal(key, (2, 4, 16, 16), dtype=jnp.float32)
    # Inject a few exact values so the == 2 branch is exercised
    x = x.at[0, 0, 0, 0].set(2.0).at[1, 3, 5, 7].set(2.0)

    outs = pt_module_forward(x)
    outs = jax.block_until_ready(outs)

    # Reference check in plain JAX
    ref = (x + 2, x - 3, x * 4, x / 5, x > 1, x < 5, x == 2)
    ok = True
    for got, want in zip(outs, ref):
        if got.dtype == jnp.bool_:
            ok = ok and bool(jnp.all(got == want))
        else:
            ok = ok and bool(jnp.allclose(got, want, rtol=1e-6, atol=1e-6))
        ok = ok and (got.shape == want.shape) and (got.dtype == want.dtype)

    if ok:
        print("KERNEL_OK")
    else:
        print("KERNEL_MISMATCH")
</pallas_src>

<mosaic_0001>
module attributes {stable_mosaic.version = 11 : i64} {
  func.func @_elementwise_kernel(%arg0: i32, %arg1: memref<32x128xf32, #tpu.memory_space<vmem>>, %arg2: memref<32x128xf32, #tpu.memory_space<vmem>>, %arg3: memref<32x128xf32, #tpu.memory_space<vmem>>, %arg4: memref<32x128xf32, #tpu.memory_space<vmem>>, %arg5: memref<32x128xf32, #tpu.memory_space<vmem>>, %arg6: memref<32x128xi8, #tpu.memory_space<vmem>>, %arg7: memref<32x128xi8, #tpu.memory_space<vmem>>, %arg8: memref<32x128xi8, #tpu.memory_space<vmem>>) attributes {dimension_semantics = [#tpu.dimension_semantics<parallel>], iteration_bounds = array<i64: 1>, scalar_prefetch = 0 : i64, scratch_operands = 0 : i64, tpu.core_type = #tpu.core_type<tc>, window_params = [{transform_indices = @transform_0, window_bounds = array<i64: 32, 128>}, {transform_indices = @transform_1, window_bounds = array<i64: 32, 128>}, {transform_indices = @transform_2, window_bounds = array<i64: 32, 128>}, {transform_indices = @transform_3, window_bounds = array<i64: 32, 128>}, {transform_indices = @transform_4, window_bounds = array<i64: 32, 128>}, {transform_indices = @transform_5, window_bounds = array<i64: 32, 128>}, {transform_indices = @transform_6, window_bounds = array<i64: 32, 128>}, {transform_indices = @transform_7, window_bounds = array<i64: 32, 128>}]} {
    %c0 = arith.constant 0 : index
    %c0_0 = arith.constant 0 : index
    %0 = vector.load %arg1[%c0, %c0_0] : memref<32x128xf32, #tpu.memory_space<vmem>>, vector<32x128xf32>
    %cst = arith.constant 2.000000e+00 : f32
    %1 = vector.broadcast %cst : f32 to vector<32x128xf32>
    %2 = arith.addf %0, %1 : vector<32x128xf32>
    %c0_1 = arith.constant 0 : index
    %c0_2 = arith.constant 0 : index
    %3 = vector.load %arg2[%c0_1, %c0_2] : memref<32x128xf32, #tpu.memory_space<vmem>>, vector<32x128xf32>
    tpu.vector_store %arg2[%c0_1, %c0_2], %2 {strides = array<i32>} : memref<32x128xf32, #tpu.memory_space<vmem>>, vector<32x128xf32>,
    %cst_3 = arith.constant 3.000000e+00 : f32
    %4 = vector.broadcast %cst_3 : f32 to vector<32x128xf32>
    %5 = arith.subf %0, %4 : vector<32x128xf32>
    %c0_4 = arith.constant 0 : index
    %c0_5 = arith.constant 0 : index
    %6 = vector.load %arg3[%c0_4, %c0_5] : memref<32x128xf32, #tpu.memory_space<vmem>>, vector<32x128xf32>
    tpu.vector_store %arg3[%c0_4, %c0_5], %5 {strides = array<i32>} : memref<32x128xf32, #tpu.memory_space<vmem>>, vector<32x128xf32>,
    %cst_6 = arith.constant 4.000000e+00 : f32
    %7 = vector.broadcast %cst_6 : f32 to vector<32x128xf32>
    %8 = arith.mulf %0, %7 : vector<32x128xf32>
    %c0_7 = arith.constant 0 : index
    %c0_8 = arith.constant 0 : index
    %9 = vector.load %arg4[%c0_7, %c0_8] : memref<32x128xf32, #tpu.memory_space<vmem>>, vector<32x128xf32>
    tpu.vector_store %arg4[%c0_7, %c0_8], %8 {strides = array<i32>} : memref<32x128xf32, #tpu.memory_space<vmem>>, vector<32x128xf32>,
    %cst_9 = arith.constant 5.000000e+00 : f32
    %10 = vector.broadcast %cst_9 : f32 to vector<32x128xf32>
    %11 = arith.divf %0, %10 : vector<32x128xf32>
    %c0_10 = arith.constant 0 : index
    %c0_11 = arith.constant 0 : index
    %12 = vector.load %arg5[%c0_10, %c0_11] : memref<32x128xf32, #tpu.memory_space<vmem>>, vector<32x128xf32>
    tpu.vector_store %arg5[%c0_10, %c0_11], %11 {strides = array<i32>} : memref<32x128xf32, #tpu.memory_space<vmem>>, vector<32x128xf32>,
    %cst_12 = arith.constant 1.000000e+00 : f32
    %13 = vector.broadcast %cst_12 : f32 to vector<32x128xf32>
    %14 = arith.cmpf ogt, %0, %13 : vector<32x128xf32>
    %15 = arith.extui %14 : vector<32x128xi1> to vector<32x128xi8>
    %c0_13 = arith.constant 0 : index
    %c0_14 = arith.constant 0 : index
    %16 = vector.load %arg6[%c0_13, %c0_14] : memref<32x128xi8, #tpu.memory_space<vmem>>, vector<32x128xi8>
    tpu.vector_store %arg6[%c0_13, %c0_14], %15 {strides = array<i32>} : memref<32x128xi8, #tpu.memory_space<vmem>>, vector<32x128xi8>,
    %cst_15 = arith.constant 5.000000e+00 : f32
    %17 = vector.broadcast %cst_15 : f32 to vector<32x128xf32>
    %18 = arith.cmpf olt, %0, %17 : vector<32x128xf32>
    %19 = arith.extui %18 : vector<32x128xi1> to vector<32x128xi8>
    %c0_16 = arith.constant 0 : index
    %c0_17 = arith.constant 0 : index
    %20 = vector.load %arg7[%c0_16, %c0_17] : memref<32x128xi8, #tpu.memory_space<vmem>>, vector<32x128xi8>
    tpu.vector_store %arg7[%c0_16, %c0_17], %19 {strides = array<i32>} : memref<32x128xi8, #tpu.memory_space<vmem>>, vector<32x128xi8>,
    %cst_18 = arith.constant 2.000000e+00 : f32
    %21 = vector.broadcast %cst_18 : f32 to vector<32x128xf32>
    %22 = arith.cmpf oeq, %0, %21 : vector<32x128xf32>
    %23 = arith.extui %22 : vector<32x128xi1> to vector<32x128xi8>
    %c0_19 = arith.constant 0 : index
    %c0_20 = arith.constant 0 : index
    %24 = vector.load %arg8[%c0_19, %c0_20] : memref<32x128xi8, #tpu.memory_space<vmem>>, vector<32x128xi8>
    tpu.vector_store %arg8[%c0_19, %c0_20], %23 {strides = array<i32>} : memref<32x128xi8, #tpu.memory_space<vmem>>, vector<32x128xi8>,
    return
  }
  func.func @transform_0(%arg0: i32) -> (i32, i32) {
    %c0_i32 = arith.constant 0 : i32
    %c0_i32_0 = arith.constant 0 : i32
    return %arg0, %c0_i32 : i32, i32
  }
  func.func @transform_1(%arg0: i32) -> (i32, i32) {
    %c0_i32 = arith.constant 0 : i32
    %c0_i32_0 = arith.constant 0 : i32
    return %arg0, %c0_i32 : i32, i32
  }
  func.func @transform_2(%arg0: i32) -> (i32, i32) {
    %c0_i32 = arith.constant 0 : i32
    %c0_i32_0 = arith.constant 0 : i32
    return %arg0, %c0_i32 : i32, i32
  }
  func.func @transform_3(%arg0: i32) -> (i32, i32) {
    %c0_i32 = arith.constant 0 : i32
    %c0_i32_0 = arith.constant 0 : i32
    return %arg0, %c0_i32 : i32, i32
  }
  func.func @transform_4(%arg0: i32) -> (i32, i32) {
    %c0_i32 = arith.constant 0 : i32
    %c0_i32_0 = arith.constant 0 : i32
    return %arg0, %c0_i32 : i32, i32
  }
  func.func @transform_5(%arg0: i32) -> (i32, i32) {
    %c0_i32 = arith.constant 0 : i32
    %c0_i32_0 = arith.constant 0 : i32
    return %arg0, %c0_i32 : i32, i32
  }
  func.func @transform_6(%arg0: i32) -> (i32, i32) {
    %c0_i32 = arith.constant 0 : i32
    %c0_i32_0 = arith.constant 0 : i32
    return %arg0, %c0_i32 : i32, i32
  }
  func.func @transform_7(%arg0: i32) -> (i32, i32) {
    %c0_i32 = arith.constant 0 : i32
    %c0_i32_0 = arith.constant 0 : i32
    return %arg0, %c0_i32 : i32, i32
  }
}

</mosaic_0001>

<llo_original>
// kernel: tpu_custom_call.1
$region0: #{tpu_custom_call.1}
  #allocation0 [shape = 'u32[]', space=smem, size = 0x4, offset = 0x4, fixed_abs, tag = 'smem constant byte address 0x4 - core index']
  #allocation1 [shape = 'u32[144,128]{1,0:T(1,128)}', space=vmem, size = 0x12000, scoped, tag = 'internal scratch']
  %s0 = inlined_call_operand.hbm [shape: f32[32,128], index: 0, kind: input, shape index: {}]
  %s1 = inlined_call_operand.hbm [shape: f32[32,128], index: 1, kind: output, shape index: {0}]
  %s2 = inlined_call_operand.hbm [shape: f32[32,128], index: 2, kind: output, shape index: {1}]
  %s3 = inlined_call_operand.hbm [shape: f32[32,128], index: 3, kind: output, shape index: {2}]
  %s4 = inlined_call_operand.hbm [shape: f32[32,128], index: 4, kind: output, shape index: {3}]
  %s5 = inlined_call_operand.hbm [shape: s8[32,128], index: 5, kind: output, shape index: {4}]
  %s6 = inlined_call_operand.hbm [shape: s8[32,128], index: 6, kind: output, shape index: {5}]
  %s7 = inlined_call_operand.hbm [shape: s8[32,128], index: 7, kind: output, shape index: {6}]
  %8 = xla_tuple %s1, %s2, %s3, %s4, %s5, %s6, %s7
  %s9 = sld [smem:[#allocation0]]
  $region66: #{tpu_custom_call.1} parent=0
    _
  %s11 = ssub.s32 1, %s9
  %s12 = scalar_select 0, %s11, %s9
  $region1: #{tpu_custom_call.1} parent=0
    #allocation2 [shape = 'u8[16384]{0}', space=vmem, size = 0x4000, scoped, tag = 'input window, operand 0, single buffered']
    #allocation3 [shape = 's32[1]{0}', space=sflag, size = 0x4, scoped, tag = 'scoped memory for tpu_custom_call.1']
    #allocation4 [shape = 's32[1]{0}', space=sflag, size = 0x4, scoped, tag = 'scoped memory for tpu_custom_call.1']
    #allocation5 [shape = 'u8[16384]{0}', space=vmem, size = 0x4000, scoped, tag = 'output window, operand 0, single buffered']
    #allocation6 [shape = 'u8[16384]{0}', space=vmem, size = 0x4000, scoped, tag = 'output window, operand 1, single buffered']
    #allocation7 [shape = 's32[1]{0}', space=sflag, size = 0x4, scoped, tag = 'scoped memory for tpu_custom_call.1']
    #allocation8 [shape = 'u8[16384]{0}', space=vmem, size = 0x4000, scoped, tag = 'output window, operand 2, single buffered']
    #allocation9 [shape = 'u8[16384]{0}', space=vmem, size = 0x4000, scoped, tag = 'output window, operand 3, single buffered']
    #allocation10 [shape = 's32[1]{0}', space=sflag, size = 0x4, scoped, tag = 'scoped memory for tpu_custom_call.1']
    #allocation11 [shape = 'u8[4096]{0}', space=vmem, size = 0x1000, scoped, tag = 'output window, operand 4, single buffered']
    #allocation12 [shape = 'u8[4096]{0}', space=vmem, size = 0x1000, scoped, tag = 'output window, operand 5, single buffered']
    #allocation13 [shape = 's32[1]{0}', space=sflag, size = 0x4, scoped, tag = 'scoped memory for tpu_custom_call.1']
    #allocation14 [shape = 'u8[4096]{0}', space=vmem, size = 0x1000, scoped, tag = 'output window, operand 6, single buffered']
    %13 = vsyncpa [#allocation3], 0
    %14 = vsyncpa [#allocation4], 0
    %15 = vsyncpa [#allocation7], 0
    %16 = vsyncpa [#allocation10], 0
    %17 = vsyncpa [#allocation13], 0
    // Predicated region
    $region2: #{tpu_custom_call.1} parent=1 // pred_check
      _
    $region3: #{tpu_custom_call.1} parent=1 // pred_check_branch
      %19 = sbr.rel (0) target = $region5
    $region4: #{tpu_custom_call.1} parent=1 // pred_region
      %s21 = ssub.s32 512, 512
      %22 = vsyncadd [#allocation3], %s21
      %s23 = sshll.u32 [#allocation2], 4
      %s24 = int_to_ptr.vmem [resolvable:$true] %s23
      %29 = dma.hbm_to_vmem [thread:$0]  %s0, 512, %s24, [#allocation3], 128, 128, 8
    $region5: #{tpu_custom_call.1} parent=1 // pred_fallthru
      _
    // Predicated region
    $region6: #{tpu_custom_call.1} parent=1 // pred_check
      _
    $region7: #{tpu_custom_call.1} parent=1 // pred_check_branch
      %31 = sbr.rel (0) target = $region9
    $region8: #{tpu_custom_call.1} parent=1 // pred_region
      %32 = dma.done [#allocation3], 512
    $region9: #{tpu_custom_call.1} parent=1 // pred_fallthru
      _
    %v35 = vld [vmem:[#allocation2] sm:$0xff]
    %v36 = vld [vmem:[#allocation2 + $0x8] sm:$0xff]
    %v37 = vld [vmem:[#allocation2 + $0x10] sm:$0xff]
    %v38 = vld [vmem:[#allocation2 + $0x18] sm:$0xff]
    %v39 = vadd.f32 %v35, 2.0
    %v40 = vadd.f32 %v36, 2.0
    %v41 = vadd.f32 %v37, 2.0
    %v42 = vadd.f32 %v38, 2.0
    %43 = vst [vmem:[#allocation5] sm:$0xff] %v39
    %44 = vst [vmem:[#allocation5 + $0x8] sm:$0xff] %v40
    %45 = vst [vmem:[#allocation5 + $0x10] sm:$0xff] %v41
    %46 = vst [vmem:[#allocation5 + $0x18] sm:$0xff] %v42
    %v47 = vsub.f32 %v35, 3.0
    %v48 = vsub.f32 %v36, 3.0
    %v49 = vsub.f32 %v37, 3.0
    %v50 = vsub.f32 %v38, 3.0
    %51 = vst [vmem:[#allocation6] sm:$0xff] %v47
    %52 = vst [vmem:[#allocation6 + $0x8] sm:$0xff] %v48
    %53 = vst [vmem:[#allocation6 + $0x10] sm:$0xff] %v49
    %54 = vst [vmem:[#allocation6 + $0x18] sm:$0xff] %v50
    %v55 = vmul.f32 %v35, 4.0
    %v56 = vmul.f32 %v36, 4.0
    %v57 = vmul.f32 %v37, 4.0
    %v58 = vmul.f32 %v38, 4.0
    %59 = vst [vmem:[#allocation8] sm:$0xff] %v55
    %60 = vst [vmem:[#allocation8 + $0x8] sm:$0xff] %v56
    %61 = vst [vmem:[#allocation8 + $0x10] sm:$0xff] %v57
    %62 = vst [vmem:[#allocation8 + $0x18] sm:$0xff] %v58
    %v63 = vrcp.pop 5.0
    %v64 = vmul.f32 %v35, %v63
    %v65 = vmul.f32 %v36, %v63
    %v66 = vmul.f32 %v37, %v63
    %v67 = vmul.f32 %v38, %v63
    %68 = vst [vmem:[#allocation9] sm:$0xff] %v64
    %69 = vst [vmem:[#allocation9 + $0x8] sm:$0xff] %v65
    %70 = vst [vmem:[#allocation9 + $0x10] sm:$0xff] %v66
    %71 = vst [vmem:[#allocation9 + $0x18] sm:$0xff] %v67
    %vm72 = vcmp.gt.f32.partialorder %v35, 1.0
    %vm73 = vcmp.gt.f32.partialorder %v36, 1.0
    %vm74 = vcmp.gt.f32.partialorder %v37, 1.0
    %vm75 = vcmp.gt.f32.partialorder %v38, 1.0
    %vm76 = vmpackc.low %vm73, %vm72
    %vm77 = vmpackc.low %vm75, %vm74
    %vm78 = vmpackc.even %vm77, %vm76
    %v79 = vsel %vm78, 16843009, 0
    %80 = vst [vmem:[#allocation11] sm:$0xff] %v79
    %vm81 = vcmp.lt.f32.partialorder %v35, 5.0
    %vm82 = vcmp.lt.f32.partialorder %v36, 5.0
    %vm83 = vcmp.lt.f32.partialorder %v37, 5.0
    %vm84 = vcmp.lt.f32.partialorder %v38, 5.0
    %vm85 = vmpackc.low %vm82, %vm81
    %vm86 = vmpackc.low %vm84, %vm83
    %vm87 = vmpackc.even %vm86, %vm85
    %v88 = vsel %vm87, 16843009, 0
    %89 = vst [vmem:[#allocation12] sm:$0xff] %v88
    %vm90 = vcmp.eq.f32.partialorder %v35, 2.0
    %vm91 = vcmp.eq.f32.partialorder %v36, 2.0
    %vm92 = vcmp.eq.f32.partialorder %v37, 2.0
    %vm93 = vcmp.eq.f32.partialorder %v38, 2.0
    %vm94 = vmpackc.low %vm91, %vm90
    %vm95 = vmpackc.low %vm93, %vm92
    %vm96 = vmpackc.even %vm95, %vm94
    %v97 = vsel %vm96, 16843009, 0
    %98 = vst [vmem:[#allocation14] sm:$0xff] %v97
    // Predicated region
    $region10: #{tpu_custom_call.1} parent=1 // pred_check
      _
    $region11: #{tpu_custom_call.1} parent=1 // pred_check_branch
      %100 = sbr.rel (0) target = $region13
    $region12: #{tpu_custom_call.1} parent=1 // pred_region
      %s102 = ssub.s32 512, 512
      %103 = vsyncadd [#allocation4], %s102
      %s104 = sshll.u32 [#allocation5], 4
      %s105 = int_to_ptr.vmem [resolvable:$true] %s104
      %110 = dma.vmem_to_hbm [thread:$0]  %s105, 512, %s1, [#allocation4], 128, 128, 8
    $region13: #{tpu_custom_call.1} parent=1 // pred_fallthru
      _
    // Predicated region
    $region14: #{tpu_custom_call.1} parent=1 // pred_check
      _
    $region15: #{tpu_custom_call.1} parent=1 // pred_check_branch
      %112 = sbr.rel (0) target = $region17
    $region16: #{tpu_custom_call.1} parent=1 // pred_region
      %s114 = ssub.s32 512, 512
      %115 = vsyncadd [#allocation7], %s114
      %s116 = sshll.u32 [#allocation6], 4
      %s117 = int_to_ptr.vmem [resolvable:$true] %s116
      %122 = dma.vmem_to_hbm [thread:$0]  %s117, 512, %s2, [#allocation7], 128, 128, 8
    $region17: #{tpu_custom_call.1} parent=1 // pred_fallthru
      _
    // Predicated region
    $region18: #{tpu_custom_call.1} parent=1 // pred_check
      _
    $region19: #{tpu_custom_call.1} parent=1 // pred_check_branch
      %124 = sbr.rel (0) target = $region21
    $region20: #{tpu_custom_call.1} parent=1 // pred_region
      %s126 = ssub.s32 512, 512
      %127 = vsyncadd [#allocation7], %s126
      %s128 = sshll.u32 [#allocation8], 4
      %s129 = int_to_ptr.vmem [resolvable:$true] %s128
      %134 = dma.vmem_to_hbm [thread:$0]  %s129, 512, %s3, [#allocation7], 128, 128, 8
    $region21: #{tpu_custom_call.1} parent=1 // pred_fallthru
      _
    // Predicated region
    $region22: #{tpu_custom_call.1} parent=1 // pred_check
      _
    $region23: #{tpu_custom_call.1} parent=1 // pred_check_branch
      %136 = sbr.rel (0) target = $region25
    $region24: #{tpu_custom_call.1} parent=1 // pred_region
      %s138 = ssub.s32 512, 512
      %139 = vsyncadd [#allocation10], %s138
      %s140 = sshll.u32 [#allocation9], 4
      %s141 = int_to_ptr.vmem [resolvable:$true] %s140
      %146 = dma.vmem_to_hbm [thread:$0]  %s141, 512, %s4, [#allocation10], 128, 128, 8
    $region25: #{tpu_custom_call.1} parent=1 // pred_fallthru
      _
    // Predicated region
    $region26: #{tpu_custom_call.1} parent=1 // pred_check
      _
    $region27: #{tpu_custom_call.1} parent=1 // pred_check_branch
      %148 = sbr.rel (0) target = $region29
    $region28: #{tpu_custom_call.1} parent=1 // pred_region
      %s150 = ssub.s32 128, 128
      %151 = vsyncadd [#allocation10], %s150
      %s153 = sshll.u32 [#allocation11], 4
      %s154 = int_to_ptr.vmem [resolvable:$true] %s153
      %156 = dma.vmem_to_hbm [thread:$0]  %s154, 128, %s5, [#allocation10]
    $region29: #{tpu_custom_call.1} parent=1 // pred_fallthru
      _
    // Predicated region
    $region30: #{tpu_custom_call.1} parent=1 // pred_check
      _
    $region31: #{tpu_custom_call.1} parent=1 // pred_check_branch
      %158 = sbr.rel (0) target = $region33
    $region32: #{tpu_custom_call.1} parent=1 // pred_region
      %s160 = ssub.s32 128, 128
      %161 = vsyncadd [#allocation13], %s160
      %s163 = sshll.u32 [#allocation12], 4
      %s164 = int_to_ptr.vmem [resolvable:$true] %s163
      %166 = dma.vmem_to_hbm [thread:$0]  %s164, 128, %s6, [#allocation13]
    $region33: #{tpu_custom_call.1} parent=1 // pred_fallthru
      _
    // Predicated region
    $region34: #{tpu_custom_call.1} parent=1 // pred_check
      _
    $region35: #{tpu_custom_call.1} parent=1 // pred_check_branch
      %168 = sbr.rel (0) target = $region37
    $region36: #{tpu_custom_call.1} parent=1 // pred_region
      %s170 = ssub.s32 128, 128
      %171 = vsyncadd [#allocation13], %s170
      %s173 = sshll.u32 [#allocation14], 4
      %s174 = int_to_ptr.vmem [resolvable:$true] %s173
      %176 = dma.vmem_to_hbm [thread:$0]  %s174, 128, %s7, [#allocation13]
    $region37: #{tpu_custom_call.1} parent=1 // pred_fallthru
      _
    // Predicated region
    $region38: #{tpu_custom_call.1} parent=1 // pred_check
      _
    $region39: #{tpu_custom_call.1} parent=1 // pred_check_branch
      %178 = sbr.rel (0) target = $region41
    $region40: #{tpu_custom_call.1} parent=1 // pred_region
      %179 = dma.done [#allocation4], 512
    $region41: #{tpu_custom_call.1} parent=1 // pred_fallthru
      _
    // Predicated region
    $region42: #{tpu_custom_call.1} parent=1 // pred_check
      _
    $region43: #{tpu_custom_call.1} parent=1 // pred_check_branch
      %181 = sbr.rel (0) target = $region45
    $region44: #{tpu_custom_call.1} parent=1 // pred_region
      %182 = dma.done [#allocation7], 512
    $region45: #{tpu_custom_call.1} parent=1 // pred_fallthru
      _
    // Predicated region
    $region46: #{tpu_custom_call.1} parent=1 // pred_check
      _
    $region47: #{tpu_custom_call.1} parent=1 // pred_check_branch
      %184 = sbr.rel (0) target = $region49
    $region48: #{tpu_custom_call.1} parent=1 // pred_region
      %185 = dma.done [#allocation7], 512
    $region49: #{tpu_custom_call.1} parent=1 // pred_fallthru
      _
    // Predicated region
    $region50: #{tpu_custom_call.1} parent=1 // pred_check
      _
    $region51: #{tpu_custom_call.1} parent=1 // pred_check_branch
      %187 = sbr.rel (0) target = $region53
    $region52: #{tpu_custom_call.1} parent=1 // pred_region
      %188 = dma.done [#allocation10], 512
    $region53: #{tpu_custom_call.1} parent=1 // pred_fallthru
      _
    // Predicated region
    $region54: #{tpu_custom_call.1} parent=1 // pred_check
      _
    $region55: #{tpu_custom_call.1} parent=1 // pred_check_branch
      %190 = sbr.rel (0) target = $region57
    $region56: #{tpu_custom_call.1} parent=1 // pred_region
      %191 = dma.done [#allocation10], 128
    $region57: #{tpu_custom_call.1} parent=1 // pred_fallthru
      _
    // Predicated region
    $region58: #{tpu_custom_call.1} parent=1 // pred_check
      _
    $region59: #{tpu_custom_call.1} parent=1 // pred_check_branch
      %193 = sbr.rel (0) target = $region61
    $region60: #{tpu_custom_call.1} parent=1 // pred_region
      %194 = dma.done [#allocation13], 128
    $region61: #{tpu_custom_call.1} parent=1 // pred_fallthru
      _
    // Predicated region
    $region62: #{tpu_custom_call.1} parent=1 // pred_check
      _
    $region63: #{tpu_custom_call.1} parent=1 // pred_check_branch
      %196 = sbr.rel (0) target = $region65
    $region64: #{tpu_custom_call.1} parent=1 // pred_region
      %197 = dma.done [#allocation13], 128
    $region65: #{tpu_custom_call.1} parent=1 // pred_fallthru
      _
    %198 = vsyncpa [#allocation3], 1
    %199 = vsyncpa [#allocation4], 1
    %200 = vsyncpa [#allocation7], 1
    %201 = vsyncpa [#allocation10], 1
    %202 = vsyncpa [#allocation13], 1

</llo_original>
